<compile_context>
chip_gen: v7x
topology: tpu7x:2x2x1
jax: 0.10.0
libtpu: 0.0.40
codegen_flags: <defaults>
</compile_context>

<pallas_src>
import jax
import jax.numpy as jnp
from jax.experimental import pallas as pl
from jax.experimental.pallas import tpu as pltpu

# ---------------- configuration (consistent with the module's asserts) ----------------
Z_A, Z_B, Z_C = 32, 16, 16
Z_TOT = Z_A + Z_B + Z_C                      # 64
STATE_KEYS = ["pos", "vel"]
STATE_SIZES = [8, 8]
OBSERVABLE_STATE_KEYS = ["pos"]
NUM_STATES = len(STATE_KEYS)
S_TOT = sum(STATE_SIZES)                     # 16
PREPEND_BACKGROUND = True
assert Z_A % NUM_STATES == 0

_SMALL_N = 1024            # below this, launch overhead dominates; single block


def _round_up(n, m):
    return ((n + m - 1) // m) * m


def _pick_row_tile():
    """Per-generation default row tile (tunable). v7x (3.2 TB/s HBM) wants bigger
    tiles to amortize the fixed per-grid-step overhead; 4096 hits the measured
    ~85% HBM-roofline plateau on v5e/v6e."""
    try:
        kind = jax.devices()[0].device_kind.lower()
    except Exception:
        kind = ""
    return 8192 if "7" in kind else 4096


# ---------------- Pallas kernel: one fused matmul pair + bias, two outputs ----------------
def _fused_proc_kernel(x_ref, wz_ref, bz_ref, ws_ref, bs_ref, oz_ref, os_ref):
    x = x_ref[...]
    acc_z = jnp.dot(x, wz_ref[...], preferred_element_type=jnp.float32)
    oz_ref[...] = (acc_z + bz_ref[...]).astype(oz_ref.dtype)
    acc_s = jnp.dot(x, ws_ref[...], preferred_element_type=jnp.float32)
    os_ref[...] = (acc_s + bs_ref[...]).astype(os_ref.dtype)


def fused_proc_linear(x, w_z, b_z, w_s, b_s, *, row_tile=None, use_bf16_io=False):
    """x: [N, K];  w_z: [K, Mz], b_z: [Mz];  w_s: [K, Ms], b_s: [Ms].
    Returns (x @ w_z + b_z, x @ w_s + b_s) with one pipelined row-tiled grid."""
    N, K = x.shape
    Mz, Ms = w_z.shape[1], w_s.shape[1]
    if row_tile is None:
        row_tile = _pick_row_tile()

    if use_bf16_io:
        # Halve HBM read/write bytes; MXU consumes bf16 directly, accumulation
        # and the bias add stay in f32.
        x = x.astype(jnp.bfloat16)
        w_z = w_z.astype(jnp.bfloat16)
        w_s = w_s.astype(jnp.bfloat16)
        out_dtype = jnp.bfloat16
    else:
        out_dtype = x.dtype
    b_z2 = b_z.reshape(1, Mz).astype(jnp.float32)
    b_s2 = b_s.reshape(1, Ms).astype(jnp.float32)

    # Tile selection: small N -> one block (overhead-dominated anyway);
    # large N -> big tiles, but always >= 2 blocks so both v7x TCs get work.
    if N <= _SMALL_N:
        tile = _round_up(N, 8)
    else:
        tile = min(row_tile, _round_up(pl.cdiv(N, 2), 8))
    grid = (pl.cdiv(N, tile),)     # partial edge block handled by Pallas

    in_bytes = jnp.dtype(x.dtype).itemsize
    out_bytes = jnp.dtype(jnp.dtype(out_dtype)).itemsize
    cost = pl.CostEstimate(
        flops=2 * N * K * (Mz + Ms),
        transcendentals=0,
        bytes_accessed=N * K * in_bytes
                       + K * (Mz + Ms) * in_bytes + (Mz + Ms) * 4
                       + N * (Mz + Ms) * out_bytes,
    )

    return pl.pallas_call(
        _fused_proc_kernel,
        out_shape=(jax.ShapeDtypeStruct((N, Mz), out_dtype),
                   jax.ShapeDtypeStruct((N, Ms), out_dtype)),
        grid=grid,
        in_specs=[
            pl.BlockSpec((tile, K), lambda i: (i, 0)),
            pl.BlockSpec((K, Mz), lambda i: (0, 0)),
            pl.BlockSpec((1, Mz), lambda i: (0, 0)),
            pl.BlockSpec((K, Ms), lambda i: (0, 0)),
            pl.BlockSpec((1, Ms), lambda i: (0, 0)),
        ],
        out_specs=(pl.BlockSpec((tile, Mz), lambda i: (i, 0)),
                   pl.BlockSpec((tile, Ms), lambda i: (i, 0))),
        compiler_params=pltpu.CompilerParams(dimension_semantics=("parallel",)),
        cost_estimate=cost,
    )(x, w_z, b_z2, w_s, b_s2)


# ---------------- parameter construction (deterministic) ----------------
def make_params(key):
    ks = jax.random.split(key, 8)
    # D: Linear(Z_TOT -> Z_A + Z_B), stored as [in, out]
    W_D = jax.random.normal(ks[0], (Z_TOT, Z_A + Z_B), jnp.float32) * 0.05
    b_D = jax.random.normal(ks[1], (Z_A + Z_B,), jnp.float32) * 0.01

    # F_in: SeparableLatentCoder([Z_A/ns]*ns -> STATE_SIZES); grouped Linears
    # realized exactly as a block-diagonal weight.
    in_group = Z_A // NUM_STATES
    W_in_bd = jnp.zeros((Z_A, S_TOT), jnp.float32)
    b_in = jnp.zeros((S_TOT,), jnp.float32)
    i_off, o_off = 0, 0
    for g, out_g in enumerate(STATE_SIZES):
        wg = jax.random.normal(ks[2 + g], (in_group, out_g), jnp.float32) * 0.1
        bg = jnp.full((out_g,), 0.01 * (g + 1), jnp.float32)
        W_in_bd = W_in_bd.at[i_off:i_off + in_group, o_off:o_off + out_g].set(wg)
        b_in = b_in.at[o_off:o_off + out_g].set(bg)
        i_off += in_group
        o_off += out_g

    # F_out: SeparableLatentCoder(STATE_SIZES -> [Z_A/ns]*ns)
    out_group = Z_A // NUM_STATES
    W_out_bd = jnp.zeros((S_TOT, Z_A), jnp.float32)
    b_out = jnp.zeros((Z_A,), jnp.float32)
    i_off, o_off = 0, 0
    for g, in_g in enumerate(STATE_SIZES):
        wg = jax.random.normal(ks[4 + g], (in_g, out_group), jnp.float32) * 0.1
        bg = jnp.full((out_group,), -0.01 * (g + 1), jnp.float32)
        W_out_bd = W_out_bd.at[i_off:i_off + in_g, o_off:o_off + out_group].set(wg)
        b_out = b_out.at[o_off:o_off + out_group].set(bg)
        i_off += in_g
        o_off += out_group

    params = dict(W_D=W_D, b_D=b_D, W_in_bd=W_in_bd, b_in=b_in,
                  W_out_bd=W_out_bd, b_out=b_out)

    # ---- algebraic folding of the last-step path into two exact weight slabs ----
    # TODO(synk): if this chain grows or moves to bf16 weights, re-validate the
    # folding tolerance (fold in higher precision and cast once).
    W_D_a, W_D_b = W_D[:, :Z_A], W_D[:, Z_A:]
    b_D_a, b_D_b = b_D[:Z_A], b_D[Z_A:]

    W_sym = W_D_a @ W_in_bd                       # [Z_TOT, S_TOT]
    b_sym = b_D_a @ W_in_bd + b_in                # [S_TOT]
    W_za = W_sym @ W_out_bd                       # [Z_TOT, Z_A]
    b_za = b_sym @ W_out_bd + b_out               # [Z_A]

    # z_c passthrough as an identity selector -> everything is one MXU matmul.
    E_c = jnp.zeros((Z_TOT, Z_C), jnp.float32).at[Z_A + Z_B:, :].set(jnp.eye(Z_C))

    params["W_z"] = jnp.concatenate([W_za, W_D_b, E_c], axis=1)          # [64, 64]
    params["b_z"] = jnp.concatenate([b_za, b_D_b,
                                     jnp.zeros((Z_C,), jnp.float32)])    # [64]
    params["W_s"] = W_sym                                                # [64, 16]
    params["b_s"] = b_sym                                                # [16]
    return params


# ---------------- ProcModule.forward ----------------
def proc_module_forward(z, z_a_sym_in, params, frame_idx=0, *,
                        row_tile=None, use_bf16_io=False):
    """z: [B, T, O, Z_TOT]; z_a_sym_in/frame_idx unused in this config (F=None)."""
    del z_a_sym_in, frame_idx
    B, T, O, Z = z.shape
    assert Z == Z_TOT

    # Only the last time step feeds the output (D is per-feature) -> slice first.
    z_last = z[:, -1, :, :].reshape(B * O, Z_TOT)                 # [B*O, 64]

    z_new_flat, z_a_sym_flat = fused_proc_linear(
        z_last, params["W_z"], params["b_z"], params["W_s"], params["b_s"],
        row_tile=row_tile, use_bf16_io=use_bf16_io)

    z_new = z_new_flat.reshape(B, 1, O, Z_TOT)                    # [z_a|z_b|z_c]
    z_a_sym = z_a_sym_flat.reshape(B, O, S_TOT)
    return z_new, z_a_sym


# ---------------- pure-JAX reference (unfused chain, mirrors PyTorch forward) ----------------
def _reference(z, params):
    d_out = z @ params["W_D"] + params["b_D"]                     # D over all T
    d_last = d_out[:, -1:]                                        # keep last step
    z_a_d, z_b = d_last[..., :Z_A], d_last[..., Z_A:]
    z_a_sym = (z_a_d @ params["W_in_bd"] + params["b_in"])[:, -1]
    z_a = (z_a_sym @ params["W_out_bd"] + params["b_out"])[:, None]
    z_c = z[:, -1:, :, -Z_C:]
    return jnp.concatenate([z_a, z_b, z_c], axis=-1), z_a_sym


if __name__ == "__main__":
    key = jax.random.PRNGKey(0)
    k_z, k_sym, k_p, k_z2 = jax.random.split(key, 4)
    params = make_params(k_p)

    # ---- toy size (launch-overhead dominated; single block) ----
    B, T, O = 2, 4, 8
    z = jax.random.normal(k_z, (B, T, O, Z_TOT), jnp.float32)
    z_a_sym_in = jax.random.normal(k_sym, (B, O, S_TOT), jnp.float32)

    z_out, z_a_sym_out = proc_module_forward(z, z_a_sym_in, params, frame_idx=0)
    jax.block_until_ready((z_out, z_a_sym_out))

    ref_z, ref_sym = _reference(z, params)
    assert z_out.shape == (B, 1, O, Z_TOT)
    assert z_a_sym_out.shape == (B, O, S_TOT)
    assert jnp.allclose(z_out, ref_z, atol=1e-4, rtol=1e-4)
    assert jnp.allclose(z_a_sym_out, ref_sym, atol=1e-4, rtol=1e-4)

    # ---- tiled path with a ragged N (exercises cdiv grid + partial edge block) ----
    B2, T2, O2 = 4, 3, 640                                        # N = 2560
    z2 = jax.random.normal(k_z2, (B2, T2, O2, Z_TOT), jnp.float32)
    z2_out, z2_sym = proc_module_forward(z2, None, params, frame_idx=0,
                                         row_tile=1024)           # grid = 3 blocks
    jax.block_until_ready((z2_out, z2_sym))
    ref2_z, ref2_sym = _reference(z2, params)
    assert jnp.allclose(z2_out, ref2_z, atol=1e-4, rtol=1e-4)
    assert jnp.allclose(z2_sym, ref2_sym, atol=1e-4, rtol=1e-4)

    # ---- bf16-I/O variant of the tiled path (halved HBM traffic) ----
    z3_out, z3_sym = proc_module_forward(z2, None, params, frame_idx=0,
                                         row_tile=1024, use_bf16_io=True)
    jax.block_until_ready((z3_out, z3_sym))
    assert z3_out.dtype == jnp.bfloat16 and z3_sym.dtype == jnp.bfloat16
    assert float(jnp.max(jnp.abs(z3_out.astype(jnp.float32) - ref2_z))) < 0.1
    assert float(jnp.max(jnp.abs(z3_sym.astype(jnp.float32) - ref2_sym))) < 0.1

    print("KERNEL_OK")
</pallas_src>

<mosaic_0001>
module attributes {stable_mosaic.version = 11 : i64} {
  func.func @_fused_proc_kernel(%arg0: i32, %arg1: memref<16x64xf32, #tpu.memory_space<vmem>>, %arg2: memref<64x64xf32, #tpu.memory_space<vmem>>, %arg3: memref<1x64xf32, #tpu.memory_space<vmem>>, %arg4: memref<64x16xf32, #tpu.memory_space<vmem>>, %arg5: memref<1x16xf32, #tpu.memory_space<vmem>>, %arg6: memref<16x64xf32, #tpu.memory_space<vmem>>, %arg7: memref<16x16xf32, #tpu.memory_space<vmem>>) attributes {dimension_semantics = [#tpu.dimension_semantics<parallel>], iteration_bounds = array<i64: 1>, scalar_prefetch = 0 : i64, scratch_operands = 0 : i64, tpu.core_type = #tpu.core_type<tc>, window_params = [{transform_indices = @transform_0, window_bounds = array<i64: 16, 64>}, {pipeline_mode = #tpu.pipeline_mode<synchronous>, transform_indices = @transform_1, window_bounds = array<i64: 64, 64>}, {pipeline_mode = #tpu.pipeline_mode<synchronous>, transform_indices = @transform_2, window_bounds = array<i64: 1, 64>}, {pipeline_mode = #tpu.pipeline_mode<synchronous>, transform_indices = @transform_3, window_bounds = array<i64: 64, 16>}, {pipeline_mode = #tpu.pipeline_mode<synchronous>, transform_indices = @transform_4, window_bounds = array<i64: 1, 16>}, {transform_indices = @transform_5, window_bounds = array<i64: 16, 64>}, {transform_indices = @transform_6, window_bounds = array<i64: 16, 16>}]} {
    %c0 = arith.constant 0 : index
    %c0_0 = arith.constant 0 : index
    %0 = vector.load %arg1[%c0, %c0_0] : memref<16x64xf32, #tpu.memory_space<vmem>>, vector<16x64xf32>
    %c0_1 = arith.constant 0 : index
    %c0_2 = arith.constant 0 : index
    %1 = vector.load %arg2[%c0_1, %c0_2] : memref<64x64xf32, #tpu.memory_space<vmem>>, vector<64x64xf32>
    %cst = arith.constant dense<0.000000e+00> : vector<16x64xf32>
    %2 = tpu.matmul %0, %1, %cst {dimension_numbers = #tpu.dot_dimension_numbers<[1], [0], [0], [1], [0, 0, 1, 1], [], []>} : vector<16x64xf32>, vector<64x64xf32>, vector<16x64xf32> -> vector<16x64xf32>
    %c0_3 = arith.constant 0 : index
    %c0_4 = arith.constant 0 : index
    %3 = vector.load %arg3[%c0_3, %c0_4] : memref<1x64xf32, #tpu.memory_space<vmem>>, vector<1x64xf32>
    %4 = vector.broadcast %3 : vector<1x64xf32> to vector<16x64xf32>
    %5 = arith.addf %2, %4 : vector<16x64xf32>
    %c0_5 = arith.constant 0 : index
    %c0_6 = arith.constant 0 : index
    %6 = vector.load %arg6[%c0_5, %c0_6] : memref<16x64xf32, #tpu.memory_space<vmem>>, vector<16x64xf32>
    tpu.vector_store %arg6[%c0_5, %c0_6], %5 {strides = array<i32>} : memref<16x64xf32, #tpu.memory_space<vmem>>, vector<16x64xf32>,
    %c0_7 = arith.constant 0 : index
    %c0_8 = arith.constant 0 : index
    %7 = vector.load %arg4[%c0_7, %c0_8] : memref<64x16xf32, #tpu.memory_space<vmem>>, vector<64x16xf32>
    %cst_9 = arith.constant dense<0.000000e+00> : vector<16x16xf32>
    %8 = tpu.matmul %0, %7, %cst_9 {dimension_numbers = #tpu.dot_dimension_numbers<[1], [0], [0], [1], [0, 0, 1, 1], [], []>} : vector<16x64xf32>, vector<64x16xf32>, vector<16x16xf32> -> vector<16x16xf32>
    %c0_10 = arith.constant 0 : index
    %c0_11 = arith.constant 0 : index
    %9 = vector.load %arg5[%c0_10, %c0_11] : memref<1x16xf32, #tpu.memory_space<vmem>>, vector<1x16xf32>
    %10 = vector.broadcast %9 : vector<1x16xf32> to vector<16x16xf32>
    %11 = arith.addf %8, %10 : vector<16x16xf32>
    %c0_12 = arith.constant 0 : index
    %c0_13 = arith.constant 0 : index
    %12 = vector.load %arg7[%c0_12, %c0_13] : memref<16x16xf32, #tpu.memory_space<vmem>>, vector<16x16xf32>
    tpu.vector_store %arg7[%c0_12, %c0_13], %11 {strides = array<i32>} : memref<16x16xf32, #tpu.memory_space<vmem>>, vector<16x16xf32>,
    return
  }
  func.func @transform_0(%arg0: i32) -> (i32, i32) {
    %c0_i32 = arith.constant 0 : i32
    %c0_i32_0 = arith.constant 0 : i32
    return %arg0, %c0_i32 : i32, i32
  }
  func.func @transform_1(%arg0: i32) -> (i32, i32) {
    %c0_i32 = arith.constant 0 : i32
    %c0_i32_0 = arith.constant 0 : i32
    %c0_i32_1 = arith.constant 0 : i32
    return %c0_i32, %c0_i32_0 : i32, i32
  }
  func.func @transform_2(%arg0: i32) -> (i32, i32) {
    %c0_i32 = arith.constant 0 : i32
    %c0_i32_0 = arith.constant 0 : i32
    %c0_i32_1 = arith.constant 0 : i32
    return %c0_i32, %c0_i32_0 : i32, i32
  }
  func.func @transform_3(%arg0: i32) -> (i32, i32) {
    %c0_i32 = arith.constant 0 : i32
    %c0_i32_0 = arith.constant 0 : i32
    %c0_i32_1 = arith.constant 0 : i32
    return %c0_i32, %c0_i32_0 : i32, i32
  }
  func.func @transform_4(%arg0: i32) -> (i32, i32) {
    %c0_i32 = arith.constant 0 : i32
    %c0_i32_0 = arith.constant 0 : i32
    %c0_i32_1 = arith.constant 0 : i32
    return %c0_i32, %c0_i32_0 : i32, i32
  }
  func.func @transform_5(%arg0: i32) -> (i32, i32) {
    %c0_i32 = arith.constant 0 : i32
    %c0_i32_0 = arith.constant 0 : i32
    return %arg0, %c0_i32 : i32, i32
  }
  func.func @transform_6(%arg0: i32) -> (i32, i32) {
    %c0_i32 = arith.constant 0 : i32
    %c0_i32_0 = arith.constant 0 : i32
    return %arg0, %c0_i32 : i32, i32
  }
}

</mosaic_0001>

<llo_original>
// kernel: tpu_custom_call.1
$region0: #{tpu_custom_call.1}
  #allocation0 [shape = 'u32[]', space=smem, size = 0x4, offset = 0x4, fixed_abs, tag = 'smem constant byte address 0x4 - core index']
  #allocation1 [shape = 'u32[144,128]{1,0:T(1,128)}', space=vmem, size = 0x12000, scoped, tag = 'internal scratch']
  %s0 = inlined_call_operand.vmem [shape: f32[16,64], index: 0, kind: input, shape index: {}]
  %s1 = inlined_call_operand.vmem [shape: f32[64,64], index: 1, kind: input, shape index: {}]
  %s2 = inlined_call_operand.vmem [shape: f32[1,64], index: 2, kind: input, shape index: {}]
  %s3 = inlined_call_operand.vmem [shape: f32[64,16], index: 3, kind: input, shape index: {}]
  %s4 = inlined_call_operand.vmem [shape: f32[1,16], index: 4, kind: input, shape index: {}]
  %s5 = inlined_call_operand.hbm [shape: f32[16,64], index: 5, kind: output, shape index: {0}]
  %s6 = inlined_call_operand.hbm [shape: f32[16,16], index: 6, kind: output, shape index: {1}]
  %7 = xla_tuple %s5, %s6
  %s8 = sld [smem:[#allocation0]]
  $region38: #{tpu_custom_call.1} parent=0
    _
  %s10 = ssub.s32 1, %s8
  %s11 = scalar_select 0, %s10, %s8
  $region1: #{tpu_custom_call.1} parent=0
    #allocation2 [shape = 'u8[8192]{0}', space=vmem, size = 0x2000, scoped, tag = 'output window, operand 0, single buffered']
    #allocation3 [shape = 's32[1]{0}', space=sflag, size = 0x4, scoped, tag = 'scoped memory for tpu_custom_call.1']
    #allocation4 [shape = 'u8[8192]{0}', space=vmem, size = 0x2000, scoped, tag = 'output window, operand 1, single buffered']
    #allocation5 [shape = 's32[1]{0}', space=sflag, size = 0x4, scoped, tag = 'scoped memory for tpu_custom_call.1']
    %12 = vsyncpa [#allocation3], 0
    %13 = vsyncpa [#allocation5], 0
    // Predicated region
    $region2: #{tpu_custom_call.1} parent=1 // pred_check
      _
    $region3: #{tpu_custom_call.1} parent=1 // pred_check_branch
      %15 = sbr.rel (0) target = $region5
    $region4: #{tpu_custom_call.1} parent=1 // pred_region
      _
    $region5: #{tpu_custom_call.1} parent=1 // pred_fallthru
      _
    // Predicated region
    $region6: #{tpu_custom_call.1} parent=1 // pred_check
      _
    $region7: #{tpu_custom_call.1} parent=1 // pred_check_branch
      %17 = sbr.rel (0) target = $region9
    $region8: #{tpu_custom_call.1} parent=1 // pred_region
      _
    $region9: #{tpu_custom_call.1} parent=1 // pred_fallthru
      _
    // Predicated region
    $region10: #{tpu_custom_call.1} parent=1 // pred_check
      _
    $region11: #{tpu_custom_call.1} parent=1 // pred_check_branch
      %19 = sbr.rel (0) target = $region13
    $region12: #{tpu_custom_call.1} parent=1 // pred_region
      _
    $region13: #{tpu_custom_call.1} parent=1 // pred_fallthru
      _
    // Predicated region
    $region14: #{tpu_custom_call.1} parent=1 // pred_check
      _
    $region15: #{tpu_custom_call.1} parent=1 // pred_check_branch
      %21 = sbr.rel (0) target = $region17
    $region16: #{tpu_custom_call.1} parent=1 // pred_region
      _
    $region17: #{tpu_custom_call.1} parent=1 // pred_fallthru
      _
    // Predicated region
    $region18: #{tpu_custom_call.1} parent=1 // pred_check
      _
    $region19: #{tpu_custom_call.1} parent=1 // pred_check_branch
      %23 = sbr.rel (0) target = $region21
    $region20: #{tpu_custom_call.1} parent=1 // pred_region
      _
    $region21: #{tpu_custom_call.1} parent=1 // pred_fallthru
      _
    %v24 = vld [vmem:[%s0] sm:$0xff]
    %v25 = vld [vmem:[%s0 + $0x8] sm:$0xff]
    %v26 = vld [vmem:[%s1] sm:$0xff]
    %v27 = vld [vmem:[%s1 + $0x8] sm:$0xff]
    %v28 = vld [vmem:[%s1 + $0x10] sm:$0xff]
    %v29 = vld [vmem:[%s1 + $0x18] sm:$0xff]
    %v30 = vld [vmem:[%s1 + $0x20] sm:$0xff]
    %v31 = vld [vmem:[%s1 + $0x28] sm:$0xff]
    %v32 = vld [vmem:[%s1 + $0x30] sm:$0xff]
    %v33 = vld [vmem:[%s1 + $0x38] sm:$0xff]
    %v34 = vld [vmem:[%s2] sm:$0x1]
    %v36 = vlaneseq
    %v37 = vshrl.u32 %v36, 7
    %v38 = vsub.s32 0, %v37
    %v39 = vrot.slane %v34, %v38
    %vm41 = vcmask 523264
    %v43 = vsel %vm41, %v24, 0
    %v46 = vsel %vm41, %v25, 0
    %48 = vmatprep.subr.mxu0 0.0
    %49 = vmatpush1.msra.mxu0 %v26
    %50 = vmatprep.subr.mxu0 0.0
    %51 = vmatpush1.msra.mxu0 %v27
    %52 = vmatprep.subr.mxu0 0.0
    %53 = vmatpush1.msra.mxu0 %v28
    %54 = vmatprep.subr.mxu0 0.0
    %55 = vmatpush1.msra.mxu0 %v29
    %56 = vmatprep.subr.mxu0 0.0
    %57 = vmatpush1.msra.mxu0 %v30
    %58 = vmatprep.subr.mxu0 0.0
    %59 = vmatpush1.msra.mxu0 %v31
    %60 = vmatprep.subr.mxu0 0.0
    %61 = vmatpush1.msra.mxu0 %v32
    %62 = vmatprep.subr.mxu0 0.0
    %63 = vmatpush1.msra.mxu0 %v33
    %64 = vmatprep.subr.mxu0 0.0
    %65 = vmatpush1.msra.mxu0 0.0
    %66 = vmatprep.subr.mxu0 0.0
    %67 = vmatpush1.msra.mxu0 0.0
    %68 = vmatprep.subr.mxu0 0.0
    %69 = vmatpush1.msra.mxu0 0.0
    %70 = vmatprep.subr.mxu0 0.0
    %71 = vmatpush1.msra.mxu0 0.0
    %72 = vmatprep.subr.mxu0 0.0
    %73 = vmatpush1.msra.mxu0 0.0
    %74 = vmatprep.subr.mxu0 0.0
    %75 = vmatpush1.msra.mxu0 0.0
    %76 = vmatprep.subr.mxu0 0.0
    %77 = vmatpush1.msra.mxu0 0.0
    %78 = vmatprep.subr.mxu0 0.0
    %79 = vmatpush1.msra.mxu0 0.0
    %80 = vmatprep.subr.mxu0 0.0
    %81 = vmatpush1.msra.mxu0 0.0
    %82 = vmatprep.subr.mxu0 0.0
    %83 = vmatpush1.msra.mxu0 0.0
    %84 = vmatprep.subr.mxu0 0.0
    %85 = vmatpush1.msra.mxu0 0.0
    %86 = vmatprep.subr.mxu0 0.0
    %87 = vmatpush1.msra.mxu0 0.0
    %88 = vmatprep.subr.mxu0 0.0
    %89 = vmatpush1.msra.mxu0 0.0
    %90 = vmatprep.subr.mxu0 0.0
    %91 = vmatpush1.msra.mxu0 0.0
    %92 = vmatprep.subr.mxu0 0.0
    %93 = vmatpush1.msra.mxu0 0.0
    %94 = vmatprep.subr.mxu0 0.0
    %95 = vmatpush1.msra.mxu0 0.0
    %96 = vmatprep.subr.mxu0 0.0
    %97 = vmatpush1.msra.mxu0 0.0
    %98 = vmatprep.subr.mxu0 0.0
    %99 = vmatpush1.msra.mxu0 0.0
    %100 = vmatprep.subr.mxu0 0.0
    %101 = vmatpush1.msra.mxu0 0.0
    %102 = vmatprep.subr.mxu0 0.0
    %103 = vmatpush1.msra.mxu0 0.0
    %104 = vmatprep.subr.mxu0 0.0
    %105 = vmatpush1.msra.mxu0 0.0
    %106 = vmatprep.subr.mxu0 0.0
    %107 = vmatpush1.msra.mxu0 0.0
    %108 = vmatprep.subr.mxu0 0.0
    %109 = vmatpush1.msra.mxu0 0.0
    %110 = vmatprep.subr.mxu0 0.0
    %111 = vmatpush1.msra.mxu0 0.0
    %112 = vmatprep.mubr.f32.mxu0 0.0
    %113 = vmatmul.mubr.f32.gmra.mrb[0].mxu0 %v43
    %v114 = vpop.f32.mrb[0].mxu0
    %v115 = vadd.f32 %v39, %v114
    %v116 = vpop.f32.mrb[0].mxu0
    %117 = vmatprep.mubr.f32.mxu0 0.0
    %118 = vmatmul.mubr.f32.gmra.mrb[0].mxu0 %v46
    %v119 = vpop.f32.mrb[0].mxu0
    %v120 = vadd.f32 %v39, %v119
    %v121 = vpop.f32.mrb[0].mxu0
    %122 = vdwg.mxu0
    %123 = vst.msk [vmem:[#allocation2] sm:$0xff] %vm41, %v115
    %124 = vst.msk [vmem:[#allocation2 + $0x8] sm:$0xff] %vm41, %v120
    %v125 = vld [vmem:[%s3] sm:$0xff]
    %v126 = vld [vmem:[%s3 + $0x8] sm:$0xff]
    %v127 = vld [vmem:[%s3 + $0x10] sm:$0xff]
    %v128 = vld [vmem:[%s3 + $0x18] sm:$0xff]
    %v129 = vld [vmem:[%s3 + $0x20] sm:$0xff]
    %v130 = vld [vmem:[%s3 + $0x28] sm:$0xff]
    %v131 = vld [vmem:[%s3 + $0x30] sm:$0xff]
    %v132 = vld [vmem:[%s3 + $0x38] sm:$0xff]
    %v133 = vld [vmem:[%s4] sm:$0x1]
    %v135 = vlaneseq
    %v136 = vshrl.u32 %v135, 7
    %v137 = vsub.s32 0, %v136
    %v138 = vrot.slane %v133, %v137
    %140 = vmatprep.subr.mxu0 0.0
    %141 = vmatpush1.msra.mxu0 %v125
    %142 = vmatprep.subr.mxu0 0.0
    %143 = vmatpush1.msra.mxu0 %v126
    %144 = vmatprep.subr.mxu0 0.0
    %145 = vmatpush1.msra.mxu0 %v127
    %146 = vmatprep.subr.mxu0 0.0
    %147 = vmatpush1.msra.mxu0 %v128
    %148 = vmatprep.subr.mxu0 0.0
    %149 = vmatpush1.msra.mxu0 %v129
    %150 = vmatprep.subr.mxu0 0.0
    %151 = vmatpush1.msra.mxu0 %v130
    %152 = vmatprep.subr.mxu0 0.0
    %153 = vmatpush1.msra.mxu0 %v131
    %154 = vmatprep.subr.mxu0 0.0
    %155 = vmatpush1.msra.mxu0 %v132
    %156 = vmatprep.subr.mxu0 0.0
    %157 = vmatpush1.msra.mxu0 0.0
    %158 = vmatprep.subr.mxu0 0.0
    %159 = vmatpush1.msra.mxu0 0.0
    %160 = vmatprep.subr.mxu0 0.0
    %161 = vmatpush1.msra.mxu0 0.0
    %162 = vmatprep.subr.mxu0 0.0
    %163 = vmatpush1.msra.mxu0 0.0
    %164 = vmatprep.subr.mxu0 0.0
    %165 = vmatpush1.msra.mxu0 0.0
    %166 = vmatprep.subr.mxu0 0.0
    %167 = vmatpush1.msra.mxu0 0.0
    %168 = vmatprep.subr.mxu0 0.0
    %169 = vmatpush1.msra.mxu0 0.0
    %170 = vmatprep.subr.mxu0 0.0
    %171 = vmatpush1.msra.mxu0 0.0
    %172 = vmatprep.subr.mxu0 0.0
    %173 = vmatpush1.msra.mxu0 0.0
    %174 = vmatprep.subr.mxu0 0.0
    %175 = vmatpush1.msra.mxu0 0.0
    %176 = vmatprep.subr.mxu0 0.0
    %177 = vmatpush1.msra.mxu0 0.0
    %178 = vmatprep.subr.mxu0 0.0
    %179 = vmatpush1.msra.mxu0 0.0
    %180 = vmatprep.subr.mxu0 0.0
    %181 = vmatpush1.msra.mxu0 0.0
    %182 = vmatprep.subr.mxu0 0.0
    %183 = vmatpush1.msra.mxu0 0.0
    %184 = vmatprep.subr.mxu0 0.0
    %185 = vmatpush1.msra.mxu0 0.0
    %186 = vmatprep.subr.mxu0 0.0
    %187 = vmatpush1.msra.mxu0 0.0
    %188 = vmatprep.subr.mxu0 0.0
    %189 = vmatpush1.msra.mxu0 0.0
    %190 = vmatprep.subr.mxu0 0.0
    %191 = vmatpush1.msra.mxu0 0.0
    %192 = vmatprep.subr.mxu0 0.0
    %193 = vmatpush1.msra.mxu0 0.0
    %194 = vmatprep.subr.mxu0 0.0
    %195 = vmatpush1.msra.mxu0 0.0
    %196 = vmatprep.subr.mxu0 0.0
    %197 = vmatpush1.msra.mxu0 0.0
    %198 = vmatprep.subr.mxu0 0.0
    %199 = vmatpush1.msra.mxu0 0.0
    %200 = vmatprep.subr.mxu0 0.0
    %201 = vmatpush1.msra.mxu0 0.0
    %202 = vmatprep.subr.mxu0 0.0
    %203 = vmatpush1.msra.mxu0 0.0
    %204 = vmatprep.mubr.f32.mxu0 0.0
    %205 = vmatmul.mubr.f32.gmra.mrb[0].mxu0 %v43
    %v206 = vpop.f32.mrb[0].mxu0
    %v207 = vadd.f32 %v138, %v206
    %v208 = vpop.f32.mrb[0].mxu0
    %209 = vmatprep.mubr.f32.mxu0 0.0
    %210 = vmatmul.mubr.f32.gmra.mrb[0].mxu0 %v46
    %v211 = vpop.f32.mrb[0].mxu0
    %v212 = vadd.f32 %v138, %v211
    %v213 = vpop.f32.mrb[0].mxu0
    %214 = vdwg.mxu0
    %vm215 = vcmask 130048
    %216 = vst.msk [vmem:[#allocation4] sm:$0xff] %vm215, %v207
    %217 = vst.msk [vmem:[#allocation4 + $0x8] sm:$0xff] %vm215, %v212
    // Predicated region
    $region22: #{tpu_custom_call.1} parent=1 // pred_check
      _
    $region23: #{tpu_custom_call.1} parent=1 // pred_check_branch
      %219 = sbr.rel (0) target = $region25
    $region24: #{tpu_custom_call.1} parent=1 // pred_region
      %s221 = ssub.s32 256, 256
      %222 = vsyncadd [#allocation3], %s221
      %s223 = sshll.u32 [#allocation2], 4
      %s224 = int_to_ptr.vmem [resolvable:$true] %s223
      %229 = dma.vmem_to_hbm [thread:$0]  %s224, 256, %s5, [#allocation3], 128, 128, 8
    $region25: #{tpu_custom_call.1} parent=1 // pred_fallthru
      _
    // Predicated region
    $region26: #{tpu_custom_call.1} parent=1 // pred_check
      _
    $region27: #{tpu_custom_call.1} parent=1 // pred_check_branch
      %231 = sbr.rel (0) target = $region29
    $region28: #{tpu_custom_call.1} parent=1 // pred_region
      %s233 = ssub.s32 256, 256
      %234 = vsyncadd [#allocation5], %s233
      %s235 = sshll.u32 [#allocation4], 4
      %s236 = int_to_ptr.vmem [resolvable:$true] %s235
      %241 = dma.vmem_to_hbm [thread:$0]  %s236, 256, %s6, [#allocation5], 128, 128, 8
    $region29: #{tpu_custom_call.1} parent=1 // pred_fallthru
      _
    // Predicated region
    $region30: #{tpu_custom_call.1} parent=1 // pred_check
      _
    $region31: #{tpu_custom_call.1} parent=1 // pred_check_branch
      %243 = sbr.rel (0) target = $region33
    $region32: #{tpu_custom_call.1} parent=1 // pred_region
      %244 = dma.done [#allocation3], 256
    $region33: #{tpu_custom_call.1} parent=1 // pred_fallthru
      _
    // Predicated region
    $region34: #{tpu_custom_call.1} parent=1 // pred_check
      _
    $region35: #{tpu_custom_call.1} parent=1 // pred_check_branch
      %246 = sbr.rel (0) target = $region37
    $region36: #{tpu_custom_call.1} parent=1 // pred_region
      %247 = dma.done [#allocation5], 256
    $region37: #{tpu_custom_call.1} parent=1 // pred_fallthru
      _
    %248 = vsyncpa [#allocation3], 1
    %249 = vsyncpa [#allocation5], 1

</llo_original>
